<compile_context>
chip_gen: v7x
topology: tpu7x:2x2x1
jax: 0.10.0
libtpu: 0.0.40
codegen_flags: <defaults>
</compile_context>

<pallas_src>
import math
import functools

import jax
import jax.numpy as jnp
import numpy as np
from jax.experimental import pallas as pl
from jax.experimental.pallas import tpu as pltpu


# ----------------------------------------------------------------------------
# Parameter / buffer setup (mirrors PositionalEncoding.__init__)
# ----------------------------------------------------------------------------
def make_pe_table(d_model: int, max_len: int = 5000) -> jnp.ndarray:
    """Sinusoidal positional-encoding buffer, shape [max_len, 1, d_model]."""
    position = np.arange(0, max_len, dtype=np.float32)[:, None]            # [max_len, 1]
    div_term = np.exp(
        np.arange(0, d_model, 2, dtype=np.float32) * (-math.log(10000.0) / d_model)
    )                                                                       # [d_model/2]
    pe = np.zeros((max_len, d_model), dtype=np.float32)
    pe[:, 0::2] = np.sin(position * div_term)
    pe[:, 1::2] = np.cos(position * div_term)
    return jnp.asarray(pe[:, None, :])                                      # [max_len, 1, d_model]


# ----------------------------------------------------------------------------
# Portable counter-based PRNG helpers (lowers on TPU and in interpret mode)
# ----------------------------------------------------------------------------
_GOLDEN = np.uint32(0x9E3779B9)


def _mix32(x):
    """murmur3-style 32-bit finalizer on uint32 values."""
    x = x ^ (x >> 16)
    x = x * np.uint32(0x85EBCA6B)
    x = x ^ (x >> 13)
    x = x * np.uint32(0xC2B2AE35)
    x = x ^ (x >> 16)
    return x


# ----------------------------------------------------------------------------
# Pallas kernels
# ----------------------------------------------------------------------------
def _pe_add_kernel(x_ref, pe_ref, o_ref, *, batch):
    # x_ref: (ts, B*D)   pe_ref: (ts, D)  -> broadcast PE over the batch.
    x = x_ref[...]
    pe = pe_ref[...]
    if batch > 1:
        pe = jnp.tile(pe, (1, batch))          # (ts, D) -> (ts, B*D)
    o_ref[...] = (x + pe).astype(o_ref.dtype)


def _pe_add_dropout_kernel(seed_ref, x_ref, pe_ref, o_ref, *, p, batch):
    # Training path: add PE, then inverted dropout with a counter-based hash
    # PRNG and an integer-threshold compare (keep iff bits >= p * 2**32).
    x = x_ref[...]
    pe = pe_ref[...]
    if batch > 1:
        pe = jnp.tile(pe, (1, batch))
    y = x + pe

    ts, bd = x_ref.shape
    rows = jax.lax.broadcasted_iota(jnp.int32, (ts, bd), 0) + pl.program_id(0) * ts
    cols = jax.lax.broadcasted_iota(jnp.int32, (ts, bd), 1)
    counter = rows.astype(jnp.uint32) * np.uint32(bd) + cols.astype(jnp.uint32)
    salt = _mix32(seed_ref[0].astype(jnp.uint32) + _GOLDEN)
    bits = _mix32((counter * _GOLDEN) ^ salt)

    threshold = np.uint32(min(int(round(p * 4294967296.0)), 0xFFFFFFFF))
    keep = bits >= threshold
    scale = 1.0 / (1.0 - p)
    o_ref[...] = jnp.where(keep, y * scale, 0.0).astype(o_ref.dtype)


# ----------------------------------------------------------------------------
# Block sizing
# ----------------------------------------------------------------------------
def _pick_seq_block(seq_len, row_bytes, target_bytes=4 << 20):
    """Largest seq block (multiple of 8, or the full seq) under ~target_bytes."""
    if seq_len * row_bytes <= target_bytes:
        return seq_len
    ts = int(max(8, target_bytes // max(int(row_bytes), 1)))
    ts -= ts % 8
    return int(max(8, min(ts, seq_len)))


# ----------------------------------------------------------------------------
# Wrapper (mirrors PositionalEncoding.forward)
# ----------------------------------------------------------------------------
def positional_encoding(x, pe_table, *, dropout_p=0.1, training=False, seed=0,
                        seq_block=None):
    """x: [seq_len, batch, d_model] -> x + pe[:seq_len] (+ dropout if training)."""
    S, B, D = x.shape
    # Lane-dense presentation: x as [S, B*D]; PE as dense [S, D] in x.dtype.
    x2 = x.reshape(S, B * D)
    pe2 = pe_table[:S, 0, :].astype(x.dtype)                  # [S, D]

    row_bytes = B * D * jnp.dtype(x.dtype).itemsize
    ts = seq_block if seq_block is not None else _pick_seq_block(S, row_bytes)
    ts = int(min(ts, S))
    grid = (pl.cdiv(S, ts),)

    x_spec = pl.BlockSpec((ts, B * D), lambda i: (i, 0))
    pe_spec = pl.BlockSpec((ts, D), lambda i: (i, 0))
    out_spec = pl.BlockSpec((ts, B * D), lambda i: (i, 0))
    out_shape = jax.ShapeDtypeStruct((S, B * D), x.dtype)
    cparams = pltpu.CompilerParams(
        dimension_semantics=("parallel",),
        vmem_limit_bytes=32 << 20,
    )

    if (not training) or dropout_p <= 0.0:
        out2 = pl.pallas_call(
            functools.partial(_pe_add_kernel, batch=B),
            grid=grid,
            in_specs=[x_spec, pe_spec],
            out_specs=out_spec,
            out_shape=out_shape,
            compiler_params=cparams,
        )(x2, pe2)
    else:
        # NOTE: caller must vary `seed` across layers / steps to decorrelate masks.
        seed_arr = jnp.asarray([seed], dtype=jnp.int32)
        out2 = pl.pallas_call(
            functools.partial(_pe_add_dropout_kernel, p=float(dropout_p), batch=B),
            grid=grid,
            in_specs=[
                pl.BlockSpec(memory_space=pltpu.MemorySpace.SMEM),
                x_spec,
                pe_spec,
            ],
            out_specs=out_spec,
            out_shape=out_shape,
            compiler_params=cparams,
        )(seed_arr, x2, pe2)

    return out2.reshape(S, B, D)


# ----------------------------------------------------------------------------
# Demo / correctness check
# ----------------------------------------------------------------------------
if __name__ == "__main__":
    seq_len, batch, d_model = 8, 2, 32
    max_len = 64  # small max_len for the demo; same formula as max_len=5000

    key = jax.random.PRNGKey(0)
    x = jax.random.normal(key, (seq_len, batch, d_model), dtype=jnp.float32)

    pe_table = make_pe_table(d_model, max_len=max_len)

    # Eval-mode forward (dropout is identity), matching module.eval() in torch.
    out = positional_encoding(x, pe_table, dropout_p=0.1, training=False)
    out = jax.block_until_ready(out)

    ref = x + pe_table[:seq_len]
    np.testing.assert_allclose(np.asarray(out), np.asarray(ref), rtol=1e-6, atol=1e-6)

    # Training-mode path (in-kernel dropout).  Surviving elements must equal
    # (x + pe) / (1 - p); dropped elements are exactly zero.
    p = 0.1
    out_train = jax.block_until_ready(
        positional_encoding(x, pe_table, dropout_p=p, training=True, seed=123)
    )
    assert out_train.shape == (seq_len, batch, d_model)
    ot = np.asarray(out_train)
    rf = np.asarray(ref)
    kept = ot != 0.0
    np.testing.assert_allclose(ot[kept], (rf / (1.0 - p))[kept], rtol=1e-5, atol=1e-5)

    print("KERNEL_OK")
</pallas_src>

<mosaic_0001>
module attributes {stable_mosaic.version = 11 : i64} {
  func.func @_pe_add_kernel(%arg0: i32, %arg1: memref<8x64xf32, #tpu.memory_space<vmem>>, %arg2: memref<8x32xf32, #tpu.memory_space<vmem>>, %arg3: memref<8x64xf32, #tpu.memory_space<vmem>>) attributes {dimension_semantics = [#tpu.dimension_semantics<parallel>], iteration_bounds = array<i64: 1>, scalar_prefetch = 0 : i64, scratch_operands = 0 : i64, tpu.core_type = #tpu.core_type<tc>, window_params = [{transform_indices = @transform_0, window_bounds = array<i64: 8, 64>}, {transform_indices = @transform_1, window_bounds = array<i64: 8, 32>}, {transform_indices = @transform_2, window_bounds = array<i64: 8, 64>}]} {
    %c0 = arith.constant 0 : index
    %c0_0 = arith.constant 0 : index
    %0 = vector.load %arg1[%c0, %c0_0] : memref<8x64xf32, #tpu.memory_space<vmem>>, vector<8x64xf32>
    %c0_1 = arith.constant 0 : index
    %c0_2 = arith.constant 0 : index
    %1 = vector.load %arg2[%c0_1, %c0_2] : memref<8x32xf32, #tpu.memory_space<vmem>>, vector<8x32xf32>
    %2 = tpu.concatenate %1, %1 in 1 : vector<8x32xf32>, vector<8x32xf32> -> vector<8x64xf32>
    %3 = arith.addf %0, %2 : vector<8x64xf32>
    %c0_3 = arith.constant 0 : index
    %c0_4 = arith.constant 0 : index
    %4 = vector.load %arg3[%c0_3, %c0_4] : memref<8x64xf32, #tpu.memory_space<vmem>>, vector<8x64xf32>
    tpu.vector_store %arg3[%c0_3, %c0_4], %3 {strides = array<i32>} : memref<8x64xf32, #tpu.memory_space<vmem>>, vector<8x64xf32>,
    return
  }
  func.func @transform_0(%arg0: i32) -> (i32, i32) {
    %c0_i32 = arith.constant 0 : i32
    %c0_i32_0 = arith.constant 0 : i32
    return %arg0, %c0_i32 : i32, i32
  }
  func.func @transform_1(%arg0: i32) -> (i32, i32) {
    %c0_i32 = arith.constant 0 : i32
    %c0_i32_0 = arith.constant 0 : i32
    return %arg0, %c0_i32 : i32, i32
  }
  func.func @transform_2(%arg0: i32) -> (i32, i32) {
    %c0_i32 = arith.constant 0 : i32
    %c0_i32_0 = arith.constant 0 : i32
    return %arg0, %c0_i32 : i32, i32
  }
}

</mosaic_0001>

<llo_original>
// kernel: tpu_custom_call.1
$region0: #{tpu_custom_call.1}
  #allocation0 [shape = 'u32[]', space=smem, size = 0x4, offset = 0x4, fixed_abs, tag = 'smem constant byte address 0x4 - core index']
  #allocation1 [shape = 'u32[144,128]{1,0:T(1,128)}', space=vmem, size = 0x12000, scoped, tag = 'internal scratch']
  %s0 = inlined_call_operand.hbm [shape: f32[8,64], index: 0, kind: input, shape index: {}]
  %s1 = inlined_call_operand.hbm [shape: f32[8,32], index: 1, kind: input, shape index: {}]
  %s2 = inlined_call_operand.hbm [shape: f32[8,64], index: 2, kind: output, shape index: {}]
  %s3 = sld [smem:[#allocation0]]
  $region26: #{tpu_custom_call.1} parent=0
    _
  %s5 = ssub.s32 1, %s3
  %s6 = scalar_select 0, %s5, %s3
  $region1: #{tpu_custom_call.1} parent=0
    #allocation2 [shape = 'u8[4096]{0}', space=vmem, size = 0x1000, scoped, tag = 'input window, operand 0, single buffered']
    #allocation3 [shape = 's32[1]{0}', space=sflag, size = 0x4, scoped, tag = 'scoped memory for tpu_custom_call.1']
    #allocation4 [shape = 's32[1]{0}', space=sflag, size = 0x4, scoped, tag = 'scoped memory for tpu_custom_call.1']
    #allocation5 [shape = 'u8[4096]{0}', space=vmem, size = 0x1000, scoped, tag = 'input window, operand 1, single buffered']
    #allocation6 [shape = 's32[1]{0}', space=sflag, size = 0x4, scoped, tag = 'scoped memory for tpu_custom_call.1']
    #allocation7 [shape = 'u8[4096]{0}', space=vmem, size = 0x1000, scoped, tag = 'output window, operand 0, single buffered']
    %7 = vsyncpa [#allocation3], 0
    %8 = vsyncpa [#allocation6], 0
    %9 = vsyncpa [#allocation4], 0
    // Predicated region
    $region2: #{tpu_custom_call.1} parent=1 // pred_check
      _
    $region3: #{tpu_custom_call.1} parent=1 // pred_check_branch
      %11 = sbr.rel (0) target = $region5
    $region4: #{tpu_custom_call.1} parent=1 // pred_region
      %s13 = ssub.s32 128, 128
      %14 = vsyncadd [#allocation3], %s13
      %s16 = sshll.u32 [#allocation2], 4
      %s17 = int_to_ptr.vmem [resolvable:$true] %s16
      %19 = dma.hbm_to_vmem [thread:$0]  %s0, 128, %s17, [#allocation3]
    $region5: #{tpu_custom_call.1} parent=1 // pred_fallthru
      _
    // Predicated region
    $region6: #{tpu_custom_call.1} parent=1 // pred_check
      _
    $region7: #{tpu_custom_call.1} parent=1 // pred_check_branch
      %21 = sbr.rel (0) target = $region9
    $region8: #{tpu_custom_call.1} parent=1 // pred_region
      %s23 = ssub.s32 128, 128
      %24 = vsyncadd [#allocation6], %s23
      %s26 = sshll.u32 [#allocation5], 4
      %s27 = int_to_ptr.vmem [resolvable:$true] %s26
      %29 = dma.hbm_to_vmem [thread:$0]  %s1, 128, %s27, [#allocation6]
    $region9: #{tpu_custom_call.1} parent=1 // pred_fallthru
      _
    // Predicated region
    $region10: #{tpu_custom_call.1} parent=1 // pred_check
      _
    $region11: #{tpu_custom_call.1} parent=1 // pred_check_branch
      %31 = sbr.rel (0) target = $region13
    $region12: #{tpu_custom_call.1} parent=1 // pred_region
      %32 = dma.done [#allocation3], 128
    $region13: #{tpu_custom_call.1} parent=1 // pred_fallthru
      _
    // Predicated region
    $region14: #{tpu_custom_call.1} parent=1 // pred_check
      _
    $region15: #{tpu_custom_call.1} parent=1 // pred_check_branch
      %34 = sbr.rel (0) target = $region17
    $region16: #{tpu_custom_call.1} parent=1 // pred_region
      %35 = dma.done [#allocation6], 128
    $region17: #{tpu_custom_call.1} parent=1 // pred_fallthru
      _
    %v36 = vld [vmem:[#allocation2] sm:$0xff]
    %v37 = vld [vmem:[#allocation5] sm:$0xff]
    %39 = vrot.lane.b32.xlu0 %v37, 32
    %v40 = vpop.permute.xlu0 %39
    %vm42 = vcmask 261120
    %v43 = vsel %vm42, %v37, %v40
    %v44 = vadd.f32 %v36, %v43
    %vm45 = vcmask 523264
    %46 = vst.msk [vmem:[#allocation7] sm:$0xff] %vm45, %v44
    // Predicated region
    $region18: #{tpu_custom_call.1} parent=1 // pred_check
      _
    $region19: #{tpu_custom_call.1} parent=1 // pred_check_branch
      %48 = sbr.rel (0) target = $region21
    $region20: #{tpu_custom_call.1} parent=1 // pred_region
      %s50 = ssub.s32 128, 128
      %51 = vsyncadd [#allocation4], %s50
      %s53 = sshll.u32 [#allocation7], 4
      %s54 = int_to_ptr.vmem [resolvable:$true] %s53
      %56 = dma.vmem_to_hbm [thread:$0]  %s54, 128, %s2, [#allocation4]
    $region21: #{tpu_custom_call.1} parent=1 // pred_fallthru
      _
    // Predicated region
    $region22: #{tpu_custom_call.1} parent=1 // pred_check
      _
    $region23: #{tpu_custom_call.1} parent=1 // pred_check_branch
      %58 = sbr.rel (0) target = $region25
    $region24: #{tpu_custom_call.1} parent=1 // pred_region
      %59 = dma.done [#allocation4], 128
    $region25: #{tpu_custom_call.1} parent=1 // pred_fallthru
      _
    %60 = vsyncpa [#allocation3], 1
    %61 = vsyncpa [#allocation6], 1
    %62 = vsyncpa [#allocation4], 1

</llo_original>
